<compile_context>
chip_gen: v7x
topology: tpu7x:2x2x1
jax: 0.10.0
libtpu: 0.0.40
codegen_flags: <defaults>
</compile_context>

<pallas_src>
import jax
import jax.numpy as jnp
from jax import lax
from jax.experimental import pallas as pl
from jax.experimental.pallas import tpu as pltpu

L_IN = 15            # input length
C1, K1 = 8, 3        # conv1 out_channels, kernel_size
L1 = L_IN - K1 + 1   # 13
L2 = L1 // 2         # 6   (maxpool k=2, s=2 drops the trailing element)
C2, K2 = 8, 3        # conv2 out_channels, kernel_size
L3 = L2 - K2 + 1     # 4
R1 = 2 * C1 * L2     # 96  conv1-matmul rows (even half | odd half)
RP = C1 * L2         # 48  pooled rows
R2 = C2 * L3         # 32  conv2-matmul rows


def _multi_conv_kernel(x_ref, w1_ref, b1_ref, w2_ref, b2_ref, out_ref):
    x = x_ref[...]                                                # [15, TB] bf16

    # conv1 for all 12 output positions: ONE bf16 MXU matmul, f32 accumulation.
    o1 = jnp.dot(w1_ref[...], x,
                 preferred_element_type=jnp.float32)              # [96, TB]
    o1 = jnp.maximum(o1 + b1_ref[...], 0.0)                       # bias + ReLU

    # maxpool(2,2): even-position half vs odd-position half (8-row aligned slices).
    pooled = jnp.maximum(o1[:RP, :], o1[RP:, :])                  # [48, TB]

    # conv2 for all 4 output positions: ONE block-Toeplitz MXU matmul.
    o2 = jnp.dot(w2_ref[...], pooled,
                 preferred_element_type=jnp.float32)              # [32, TB]

    # max over the 4 output positions (8-row groups), then bias, channel max, sigmoid.
    m = jnp.maximum(jnp.maximum(o2[0:8, :], o2[8:16, :]),
                    jnp.maximum(o2[16:24, :], o2[24:32, :]))      # [8, TB]
    m = m + b2_ref[...]
    m = jnp.max(m, axis=0, keepdims=True)                         # [1, TB]
    out_ref[...] = jax.nn.sigmoid(m)                              # lane-dense store


def _build_w1(w1_2d):
    """Conv1 weights -> [96, 15]: rows 8j:8j+8 = position 2j, rows 48+8j.. = 2j+1."""
    W = jnp.zeros((R1, L_IN), jnp.float32)
    for j in range(L2):
        for p in range(2):
            l = 2 * j + p
            r0 = p * RP + C1 * j
            W = W.at[r0:r0 + C1, l:l + K1].set(w1_2d)
    return W


def _build_w2(w2):
    """Conv2 weights -> block-Toeplitz [32, 48]: W[8l+o, 8(l+k)+ci] = w2[o, ci, k]."""
    W = jnp.zeros((R2, RP), jnp.float32)
    for l in range(L3):
        for k in range(K2):
            W = W.at[l * C2:(l + 1) * C2, (l + k) * C1:(l + k + 1) * C1].set(w2[:, :, k])
    return W


def _round_up(a, m):
    return (a + m - 1) // m * m


def multi_conv_forward(x, w1, b1, w2, b2, *, tb=8192):
    """x: [B, 1, 15] float32; weights in PyTorch Conv1d layout. Returns [B] float32."""
    assert w1.shape == (C1, 1, K1), "conv1 expects in_channels == 1"
    B = x.shape[0]

    # Batch on the lane (last) axis; bf16 cast fused into the same transpose pass.
    # TODO(synk): if the producer can emit x as [15, B] bf16 directly, drop this pass.
    xt = x.reshape(B, L_IN).T.astype(jnp.bfloat16)                # [15, B]

    # Tile choice: as large as possible (amortize the ~0.35us per-step overhead),
    # multiple of 128; split into two tiles when a large batch would otherwise be a
    # single tile so v7x's two TensorCores both get work (neutral on v5e/v6e).
    tb = max(128, _round_up(int(tb), 128))
    bp = _round_up(B, 128)
    tb_eff = min(tb, bp)
    if bp > 4096 and tb_eff == bp:
        tb_eff = _round_up(bp // 2, 128)
    n_tiles = pl.cdiv(bp, tb_eff)
    bp = n_tiles * tb_eff
    if bp != B:
        xt = jnp.pad(xt, ((0, 0), (0, bp - B)))                   # zero-pad batch tail

    w1f = _build_w1(w1[:, 0, :].astype(jnp.float32)).astype(jnp.bfloat16)  # [96, 15]
    b1c = jnp.tile(b1.astype(jnp.float32), 2 * L2).reshape(R1, 1)          # [96, 1]
    w2f = _build_w2(w2.astype(jnp.float32))                                # [32, 48]
    b2c = b2.astype(jnp.float32).reshape(C2, 1)                            # [8, 1]

    # ~0.8 KiB VMEM per sample (double-buffered bf16 x + f32 intermediates) + headroom;
    # capped below v7x's 64 MiB physical, above v5e's 16 MiB scoped default.
    vmem_limit = int(min(48 * 2**20, max(32 * 2**20, 1200 * tb_eff)))

    cost = pl.CostEstimate(
        flops=2 * (R1 * L_IN + R2 * RP) * bp,      # ~6k flops / sample
        transcendentals=bp,                        # sigmoid
        bytes_accessed=(2 * L_IN + 4) * bp + 16_000)

    out = pl.pallas_call(
        _multi_conv_kernel,
        out_shape=jax.ShapeDtypeStruct((1, bp), jnp.float32),
        grid=(n_tiles,),
        in_specs=[
            pl.BlockSpec((L_IN, tb_eff), lambda i: (0, i)),       # x batch tile
            pl.BlockSpec((R1, L_IN), lambda i: (0, 0)),           # constant weights
            pl.BlockSpec((R1, 1), lambda i: (0, 0)),
            pl.BlockSpec((R2, RP), lambda i: (0, 0)),
            pl.BlockSpec((C2, 1), lambda i: (0, 0)),
        ],
        out_specs=pl.BlockSpec((1, tb_eff), lambda i: (0, i)),
        compiler_params=pltpu.CompilerParams(
            dimension_semantics=("parallel",),                    # independent batch tiles
            vmem_limit_bytes=vmem_limit),
        cost_estimate=cost,
    )(xt, w1f, b1c, w2f, b2c)
    return out[0, :B]                                             # [B], matches torch


def reference_forward(x, w1, b1, w2, b2):
    """Pure-JAX reference mirroring the PyTorch forward (for verification)."""
    dn = ("NCH", "OIH", "NCH")
    o1 = lax.conv_general_dilated(x, w1, (1,), "VALID", dimension_numbers=dn)
    o1 = o1 + b1[None, :, None]
    o2 = jnp.maximum(o1, 0.0)
    o3 = lax.reduce_window(o2, -jnp.inf, lax.max, (1, 1, 2), (1, 1, 2), "VALID")
    o4 = lax.conv_general_dilated(o3, w2, (1,), "VALID", dimension_numbers=dn)
    o4 = o4 + b2[None, :, None]
    o5 = jnp.max(o4, axis=-1)
    o6 = jnp.max(o5, axis=-1)
    return jax.nn.sigmoid(o6)


if __name__ == "__main__":
    key = jax.random.PRNGKey(0)
    k_x, k_w1, k_b1, k_w2, k_b2 = jax.random.split(key, 5)

    B = 2
    x = jax.random.normal(k_x, (B, 1, L_IN), dtype=jnp.float32)

    # Deterministic init mimicking PyTorch's default uniform(-1/sqrt(fan_in), +)
    bound1 = 1.0 / jnp.sqrt(1.0 * K1)            # conv1 fan_in = 1*3
    bound2 = 1.0 / jnp.sqrt(1.0 * C1 * K2)       # conv2 fan_in = 8*3
    w1 = jax.random.uniform(k_w1, (C1, 1, K1), jnp.float32, -bound1, bound1)
    b1 = jax.random.uniform(k_b1, (C1,), jnp.float32, -bound1, bound1)
    w2 = jax.random.uniform(k_w2, (C2, C1, K2), jnp.float32, -bound2, bound2)
    b2 = jax.random.uniform(k_b2, (C2,), jnp.float32, -bound2, bound2)

    out = multi_conv_forward(x, w1, b1, w2, b2)
    out = jax.block_until_ready(out)

    ref = jax.block_until_ready(reference_forward(x, w1, b1, w2, b2))
    assert out.shape == (B,), out.shape
    # bf16 input cast (f32 accumulation) -> slightly looser tolerance than pure f32.
    assert jnp.allclose(out, ref, atol=5e-3, rtol=5e-3), (out, ref)

    print("KERNEL_OK")
</pallas_src>

<mosaic_0001>
module attributes {stable_mosaic.version = 11 : i64} {
  func.func @_multi_conv_kernel(%arg0: i32, %arg1: memref<15x128xbf16, #tpu.memory_space<vmem>>, %arg2: memref<96x15xbf16, #tpu.memory_space<vmem>>, %arg3: memref<96x1xf32, #tpu.memory_space<vmem>>, %arg4: memref<32x48xf32, #tpu.memory_space<vmem>>, %arg5: memref<8x1xf32, #tpu.memory_space<vmem>>, %arg6: memref<1x128xf32, #tpu.memory_space<vmem>>) attributes {dimension_semantics = [#tpu.dimension_semantics<parallel>], iteration_bounds = array<i64: 1>, scalar_prefetch = 0 : i64, scratch_operands = 0 : i64, tpu.core_type = #tpu.core_type<tc>, window_params = [{transform_indices = @transform_0, window_bounds = array<i64: 15, 128>}, {pipeline_mode = #tpu.pipeline_mode<synchronous>, transform_indices = @transform_1, window_bounds = array<i64: 96, 15>}, {pipeline_mode = #tpu.pipeline_mode<synchronous>, transform_indices = @transform_2, window_bounds = array<i64: 96, 1>}, {pipeline_mode = #tpu.pipeline_mode<synchronous>, transform_indices = @transform_3, window_bounds = array<i64: 32, 48>}, {pipeline_mode = #tpu.pipeline_mode<synchronous>, transform_indices = @transform_4, window_bounds = array<i64: 8, 1>}, {transform_indices = @transform_5, window_bounds = array<i64: 1, 128>}]} {
    %c0 = arith.constant 0 : index
    %c0_0 = arith.constant 0 : index
    %0 = vector.load %arg1[%c0, %c0_0] : memref<15x128xbf16, #tpu.memory_space<vmem>>, vector<15x128xbf16>
    %c0_1 = arith.constant 0 : index
    %c0_2 = arith.constant 0 : index
    %1 = vector.load %arg2[%c0_1, %c0_2] : memref<96x15xbf16, #tpu.memory_space<vmem>>, vector<96x15xbf16>
    %cst = arith.constant dense<0.000000e+00> : vector<96x128xf32>
    %2 = tpu.matmul %1, %0, %cst {dimension_numbers = #tpu.dot_dimension_numbers<[1], [0], [0], [1], [0, 0, 1, 1], [], []>} : vector<96x15xbf16>, vector<15x128xbf16>, vector<96x128xf32> -> vector<96x128xf32>
    %c0_3 = arith.constant 0 : index
    %c0_4 = arith.constant 0 : index
    %3 = vector.load %arg3[%c0_3, %c0_4] : memref<96x1xf32, #tpu.memory_space<vmem>>, vector<96x1xf32>
    %4 = vector.broadcast %3 : vector<96x1xf32> to vector<96x128xf32>
    %5 = arith.addf %2, %4 : vector<96x128xf32>
    %cst_5 = arith.constant 0.000000e+00 : f32
    %6 = vector.broadcast %cst_5 : f32 to vector<96x128xf32>
    %7 = arith.maximumf %5, %6 : vector<96x128xf32>
    %8 = vector.extract_strided_slice %7 {offsets = [0, 0], sizes = [48, 128], strides = [1, 1]} : vector<96x128xf32> to vector<48x128xf32>
    %9 = vector.extract_strided_slice %7 {offsets = [48, 0], sizes = [48, 128], strides = [1, 1]} : vector<96x128xf32> to vector<48x128xf32>
    %10 = arith.maximumf %8, %9 : vector<48x128xf32>
    %c0_6 = arith.constant 0 : index
    %c0_7 = arith.constant 0 : index
    %11 = vector.load %arg4[%c0_6, %c0_7] : memref<32x48xf32, #tpu.memory_space<vmem>>, vector<32x48xf32>
    %cst_8 = arith.constant dense<0.000000e+00> : vector<32x128xf32>
    %12 = tpu.matmul %11, %10, %cst_8 {dimension_numbers = #tpu.dot_dimension_numbers<[1], [0], [0], [1], [0, 0, 1, 1], [], []>} : vector<32x48xf32>, vector<48x128xf32>, vector<32x128xf32> -> vector<32x128xf32>
    %13 = vector.extract_strided_slice %12 {offsets = [0, 0], sizes = [8, 128], strides = [1, 1]} : vector<32x128xf32> to vector<8x128xf32>
    %14 = vector.extract_strided_slice %12 {offsets = [8, 0], sizes = [8, 128], strides = [1, 1]} : vector<32x128xf32> to vector<8x128xf32>
    %15 = arith.maximumf %13, %14 : vector<8x128xf32>
    %16 = vector.extract_strided_slice %12 {offsets = [16, 0], sizes = [8, 128], strides = [1, 1]} : vector<32x128xf32> to vector<8x128xf32>
    %17 = vector.extract_strided_slice %12 {offsets = [24, 0], sizes = [8, 128], strides = [1, 1]} : vector<32x128xf32> to vector<8x128xf32>
    %18 = arith.maximumf %16, %17 : vector<8x128xf32>
    %19 = arith.maximumf %15, %18 : vector<8x128xf32>
    %c0_9 = arith.constant 0 : index
    %c0_10 = arith.constant 0 : index
    %20 = vector.load %arg5[%c0_9, %c0_10] : memref<8x1xf32, #tpu.memory_space<vmem>>, vector<8x1xf32>
    %21 = vector.broadcast %20 : vector<8x1xf32> to vector<8x128xf32>
    %22 = arith.addf %19, %21 : vector<8x128xf32>
    %cst_11 = arith.constant dense<0xFF800000> : vector<128xf32>
    %23 = vector.multi_reduction <maximumf>, %22, %cst_11 [0] : vector<8x128xf32> to vector<128xf32>
    %24 = vector.shape_cast %23 : vector<128xf32> to vector<1x128xf32>
    %25 = arith.negf %24 : vector<1x128xf32>
    %26 = math.exp %25 : vector<1x128xf32>
    %cst_12 = arith.constant 1.000000e+00 : f32
    %27 = vector.broadcast %cst_12 : f32 to vector<1x128xf32>
    %28 = arith.addf %27, %26 : vector<1x128xf32>
    %29 = arith.divf %27, %28 : vector<1x128xf32>
    %c0_13 = arith.constant 0 : index
    %c0_14 = arith.constant 0 : index
    %30 = vector.load %arg6[%c0_13, %c0_14] : memref<1x128xf32, #tpu.memory_space<vmem>>, vector<1x128xf32>
    tpu.vector_store %arg6[%c0_13, %c0_14], %29 {strides = array<i32>} : memref<1x128xf32, #tpu.memory_space<vmem>>, vector<1x128xf32>,
    return
  }
  func.func @transform_0(%arg0: i32) -> (i32, i32) {
    %c0_i32 = arith.constant 0 : i32
    %c0_i32_0 = arith.constant 0 : i32
    return %c0_i32, %arg0 : i32, i32
  }
  func.func @transform_1(%arg0: i32) -> (i32, i32) {
    %c0_i32 = arith.constant 0 : i32
    %c0_i32_0 = arith.constant 0 : i32
    %c0_i32_1 = arith.constant 0 : i32
    return %c0_i32, %c0_i32_0 : i32, i32
  }
  func.func @transform_2(%arg0: i32) -> (i32, i32) {
    %c0_i32 = arith.constant 0 : i32
    %c0_i32_0 = arith.constant 0 : i32
    %c0_i32_1 = arith.constant 0 : i32
    return %c0_i32, %c0_i32_0 : i32, i32
  }
  func.func @transform_3(%arg0: i32) -> (i32, i32) {
    %c0_i32 = arith.constant 0 : i32
    %c0_i32_0 = arith.constant 0 : i32
    %c0_i32_1 = arith.constant 0 : i32
    return %c0_i32, %c0_i32_0 : i32, i32
  }
  func.func @transform_4(%arg0: i32) -> (i32, i32) {
    %c0_i32 = arith.constant 0 : i32
    %c0_i32_0 = arith.constant 0 : i32
    %c0_i32_1 = arith.constant 0 : i32
    return %c0_i32, %c0_i32_0 : i32, i32
  }
  func.func @transform_5(%arg0: i32) -> (i32, i32) {
    %c0_i32 = arith.constant 0 : i32
    %c0_i32_0 = arith.constant 0 : i32
    return %c0_i32, %arg0 : i32, i32
  }
}

</mosaic_0001>

<llo_original>
// kernel: tpu_custom_call.1
$region0: #{tpu_custom_call.1}
  #allocation0 [shape = 'u32[]', space=smem, size = 0x4, offset = 0x4, fixed_abs, tag = 'smem constant byte address 0x4 - core index']
  #allocation1 [shape = 'u32[144,128]{1,0:T(1,128)}', space=vmem, size = 0x12000, scoped, tag = 'internal scratch']
  %s0 = inlined_call_operand.vmem [shape: bf16[15,128], index: 0, kind: input, shape index: {}]
  %s1 = inlined_call_operand.vmem [shape: bf16[96,15], index: 1, kind: input, shape index: {}]
  %s2 = inlined_call_operand.vmem [shape: f32[96,1], index: 2, kind: input, shape index: {}]
  %s3 = inlined_call_operand.vmem [shape: f32[32,48], index: 3, kind: input, shape index: {}]
  %s4 = inlined_call_operand.vmem [shape: f32[8,1], index: 4, kind: input, shape index: {}]
  %s5 = inlined_call_operand.hbm [shape: f32[1,128], index: 5, kind: output, shape index: {}]
  %s6 = sld [smem:[#allocation0]]
  $region30: #{tpu_custom_call.1} parent=0
    _
  %s8 = ssub.s32 1, %s6
  %s9 = scalar_select 0, %s8, %s6
  $region1: #{tpu_custom_call.1} parent=0
    #allocation2 [shape = 'u8[512]{0}', space=vmem, size = 0x400, scoped, tag = 'output window, operand 0, single buffered']
    #allocation3 [shape = 's32[1]{0}', space=sflag, size = 0x4, scoped, tag = 'scoped memory for tpu_custom_call.1']
    %10 = vsyncpa [#allocation3], 0
    // Predicated region
    $region2: #{tpu_custom_call.1} parent=1 // pred_check
      _
    $region3: #{tpu_custom_call.1} parent=1 // pred_check_branch
      %12 = sbr.rel (0) target = $region5
    $region4: #{tpu_custom_call.1} parent=1 // pred_region
      _
    $region5: #{tpu_custom_call.1} parent=1 // pred_fallthru
      _
    // Predicated region
    $region6: #{tpu_custom_call.1} parent=1 // pred_check
      _
    $region7: #{tpu_custom_call.1} parent=1 // pred_check_branch
      %14 = sbr.rel (0) target = $region9
    $region8: #{tpu_custom_call.1} parent=1 // pred_region
      _
    $region9: #{tpu_custom_call.1} parent=1 // pred_fallthru
      _
    // Predicated region
    $region10: #{tpu_custom_call.1} parent=1 // pred_check
      _
    $region11: #{tpu_custom_call.1} parent=1 // pred_check_branch
      %16 = sbr.rel (0) target = $region13
    $region12: #{tpu_custom_call.1} parent=1 // pred_region
      _
    $region13: #{tpu_custom_call.1} parent=1 // pred_fallthru
      _
    // Predicated region
    $region14: #{tpu_custom_call.1} parent=1 // pred_check
      _
    $region15: #{tpu_custom_call.1} parent=1 // pred_check_branch
      %18 = sbr.rel (0) target = $region17
    $region16: #{tpu_custom_call.1} parent=1 // pred_region
      _
    $region17: #{tpu_custom_call.1} parent=1 // pred_fallthru
      _
    // Predicated region
    $region18: #{tpu_custom_call.1} parent=1 // pred_check
      _
    $region19: #{tpu_custom_call.1} parent=1 // pred_check_branch
      %20 = sbr.rel (0) target = $region21
    $region20: #{tpu_custom_call.1} parent=1 // pred_region
      _
    $region21: #{tpu_custom_call.1} parent=1 // pred_fallthru
      _
    %v22 = vld [vmem:[%s0] sm:$0xf]
    %v23 = vld [vmem:[%s0 + $0x4] sm:$0xf]
    %v24 = vld [vmem:[%s1] sm:$0xf]
    %v25 = vld [vmem:[%s1 + $0x4] sm:$0xf]
    %v26 = vld [vmem:[%s1 + $0x8] sm:$0xf]
    %v27 = vld [vmem:[%s1 + $0xc] sm:$0xf]
    %v28 = vld [vmem:[%s1 + $0x10] sm:$0xf]
    %v29 = vld [vmem:[%s1 + $0x14] sm:$0xf]
    %v30 = vld [vmem:[%s1 + $0x18] sm:$0xf]
    %v31 = vld [vmem:[%s1 + $0x1c] sm:$0xf]
    %v32 = vld [vmem:[%s1 + $0x20] sm:$0xf]
    %v33 = vld [vmem:[%s1 + $0x24] sm:$0xf]
    %v34 = vld [vmem:[%s1 + $0x28] sm:$0xf]
    %v35 = vld [vmem:[%s1 + $0x2c] sm:$0xf]
    %v36 = vld [vmem:[%s2] sm:$0xff]
    %v37 = vld [vmem:[%s2 + $0x8] sm:$0xff]
    %v38 = vld [vmem:[%s2 + $0x10] sm:$0xff]
    %v39 = vld [vmem:[%s2 + $0x18] sm:$0xff]
    %v40 = vld [vmem:[%s2 + $0x20] sm:$0xff]
    %v41 = vld [vmem:[%s2 + $0x28] sm:$0xff]
    %v42 = vld [vmem:[%s2 + $0x30] sm:$0xff]
    %v43 = vld [vmem:[%s2 + $0x38] sm:$0xff]
    %v44 = vld [vmem:[%s2 + $0x40] sm:$0xff]
    %v45 = vld [vmem:[%s2 + $0x48] sm:$0xff]
    %v46 = vld [vmem:[%s2 + $0x50] sm:$0xff]
    %v47 = vld [vmem:[%s2 + $0x58] sm:$0xff]
    %49 = vset.pattern.permute.xlu0 0
    %50 = vperm.xlu0 %49, %v36
    %v51 = vpop.permute.xlu0 %50
    %54 = vset.pattern.permute.xlu0 0
    %55 = vperm.xlu0 %54, %v37
    %v56 = vpop.permute.xlu0 %55
    %59 = vset.pattern.permute.xlu0 0
    %60 = vperm.xlu0 %59, %v38
    %v61 = vpop.permute.xlu0 %60
    %64 = vset.pattern.permute.xlu0 0
    %65 = vperm.xlu0 %64, %v39
    %v66 = vpop.permute.xlu0 %65
    %69 = vset.pattern.permute.xlu0 0
    %70 = vperm.xlu0 %69, %v40
    %v71 = vpop.permute.xlu0 %70
    %74 = vset.pattern.permute.xlu0 0
    %75 = vperm.xlu0 %74, %v41
    %v76 = vpop.permute.xlu0 %75
    %79 = vset.pattern.permute.xlu0 0
    %80 = vperm.xlu0 %79, %v42
    %v81 = vpop.permute.xlu0 %80
    %84 = vset.pattern.permute.xlu0 0
    %85 = vperm.xlu0 %84, %v43
    %v86 = vpop.permute.xlu0 %85
    %89 = vset.pattern.permute.xlu0 0
    %90 = vperm.xlu0 %89, %v44
    %v91 = vpop.permute.xlu0 %90
    %94 = vset.pattern.permute.xlu0 0
    %95 = vperm.xlu0 %94, %v45
    %v96 = vpop.permute.xlu0 %95
    %99 = vset.pattern.permute.xlu0 0
    %100 = vperm.xlu0 %99, %v46
    %v101 = vpop.permute.xlu0 %100
    %104 = vset.pattern.permute.xlu0 0
    %105 = vperm.xlu0 %104, %v47
    %v106 = vpop.permute.xlu0 %105
    %v120 = vunpack.c.l.b16 %v24
    %v121 = vunpack.c.l.b16 %v25
    %v122 = vunpack.c.l.b16 %v26
    %v123 = vunpack.c.l.b16 %v27
    %v124 = vunpack.c.l.b16 %v28
    %v125 = vunpack.c.l.b16 %v29
    %v126 = vunpack.c.l.b16 %v30
    %v127 = vunpack.c.l.b16 %v31
    %v128 = vunpack.c.l.b16 %v32
    %v129 = vunpack.c.l.b16 %v33
    %v130 = vunpack.c.l.b16 %v34
    %v131 = vunpack.c.l.b16 %v35
    %v132 = vpack.c.b16 %v121, %v120
    %v133 = vpack.c.b16 %v123, %v122
    %v134 = vpack.c.b16 %v125, %v124
    %v135 = vpack.c.b16 %v127, %v126
    %v136 = vpack.c.b16 %v129, %v128
    %v137 = vpack.c.b16 %v131, %v130
    %v140 = vunpack.c.l.b16 %v22
    %v141 = vunpack.c.l.b16 %v23
    %v142 = vpack.c.b16 %v141, %v140
    %vm143 = vcmask 121856
    %v145 = vsel %vm143, %v132, 0
    %v148 = vsel %vm143, %v133, 0
    %v151 = vsel %vm143, %v134, 0
    %v154 = vsel %vm143, %v135, 0
    %v157 = vsel %vm143, %v136, 0
    %v160 = vsel %vm143, %v137, 0
    %vm162 = vcmask 1046528
    %vm163 = vcmask 1047552
    %v164 = vsel %vm162, 4294967295, 65535
    %v165 = vsel %vm163, %v164, 0
    %v167 = vand.u32 %v142, %v165
    %169 = vmatprep.subr.bf16.mxu0 0
    %170 = vmatpush1.bf16.msra.mxu0 %v167
    %171 = vmatprep.subr.bf16.mxu0 0
    %172 = vmatpush1.bf16.msra.mxu0 0
    %173 = vmatprep.subr.bf16.mxu0 0
    %174 = vmatpush1.bf16.msra.mxu0 0
    %175 = vmatprep.subr.bf16.mxu0 0
    %176 = vmatpush1.bf16.msra.mxu0 0
    %177 = vmatprep.subr.bf16.mxu0 0
    %178 = vmatpush1.bf16.msra.mxu0 0
    %179 = vmatprep.subr.bf16.mxu0 0
    %180 = vmatpush1.bf16.msra.mxu0 0
    %181 = vmatprep.subr.bf16.mxu0 0
    %182 = vmatpush1.bf16.msra.mxu0 0
    %183 = vmatprep.subr.bf16.mxu0 0
    %184 = vmatpush1.bf16.msra.mxu0 0
    %185 = vmatprep.subr.bf16.mxu0 0
    %186 = vmatpush1.bf16.msra.mxu0 0
    %187 = vmatprep.subr.bf16.mxu0 0
    %188 = vmatpush1.bf16.msra.mxu0 0
    %189 = vmatprep.subr.bf16.mxu0 0
    %190 = vmatpush1.bf16.msra.mxu0 0
    %191 = vmatprep.subr.bf16.mxu0 0
    %192 = vmatpush1.bf16.msra.mxu0 0
    %193 = vmatprep.subr.bf16.mxu0 0
    %194 = vmatpush1.bf16.msra.mxu0 0
    %195 = vmatprep.subr.bf16.mxu0 0
    %196 = vmatpush1.bf16.msra.mxu0 0
    %197 = vmatprep.subr.bf16.mxu0 0
    %198 = vmatpush1.bf16.msra.mxu0 0
    %199 = vmatprep.subr.bf16.mxu0 0
    %200 = vmatpush1.bf16.msra.mxu0 0
    %201 = vmatprep.mubr.bf16.mxu0 0
    %202 = vmatmul.mubr.bf16.gmra.mrb[0].mxu0 %v145
    %v203 = vpop.f32.mrb[0].mxu0
    %v204 = vadd.f32 %v51, %v203
    %v205 = vpop.f32.mrb[0].mxu0
    %v206 = vpop.f32.mrb[0].mxu0
    %v207 = vadd.f32 %v56, %v206
    %v208 = vpop.f32.mrb[0].mxu0
    %209 = vmatprep.mubr.bf16.mxu0 0
    %210 = vmatmul.mubr.bf16.gmra.mrb[0].mxu0 %v148
    %v211 = vpop.f32.mrb[0].mxu0
    %v212 = vadd.f32 %v61, %v211
    %v213 = vpop.f32.mrb[0].mxu0
    %v214 = vpop.f32.mrb[0].mxu0
    %v215 = vadd.f32 %v66, %v214
    %v216 = vpop.f32.mrb[0].mxu0
    %217 = vmatprep.mubr.bf16.mxu0 0
    %218 = vmatmul.mubr.bf16.gmra.mrb[0].mxu0 %v151
    %v219 = vpop.f32.mrb[0].mxu0
    %v220 = vadd.f32 %v71, %v219
    %v221 = vpop.f32.mrb[0].mxu0
    %v222 = vpop.f32.mrb[0].mxu0
    %v223 = vadd.f32 %v76, %v222
    %v224 = vpop.f32.mrb[0].mxu0
    %225 = vmatprep.mubr.bf16.mxu0 0
    %226 = vmatmul.mubr.bf16.gmra.mrb[0].mxu0 %v154
    %v227 = vpop.f32.mrb[0].mxu0
    %v228 = vadd.f32 %v81, %v227
    %v229 = vpop.f32.mrb[0].mxu0
    %v230 = vpop.f32.mrb[0].mxu0
    %v231 = vadd.f32 %v86, %v230
    %v232 = vpop.f32.mrb[0].mxu0
    %233 = vmatprep.mubr.bf16.mxu0 0
    %234 = vmatmul.mubr.bf16.gmra.mrb[0].mxu0 %v157
    %v235 = vpop.f32.mrb[0].mxu0
    %v236 = vadd.f32 %v91, %v235
    %v237 = vpop.f32.mrb[0].mxu0
    %v238 = vpop.f32.mrb[0].mxu0
    %v239 = vadd.f32 %v96, %v238
    %v240 = vpop.f32.mrb[0].mxu0
    %241 = vmatprep.mubr.bf16.mxu0 0
    %242 = vmatmul.mubr.bf16.gmra.mrb[0].mxu0 %v160
    %v243 = vpop.f32.mrb[0].mxu0
    %v244 = vadd.f32 %v101, %v243
    %v245 = vpop.f32.mrb[0].mxu0
    %v246 = vpop.f32.mrb[0].mxu0
    %v247 = vadd.f32 %v106, %v246
    %v248 = vpop.f32.mrb[0].mxu0
    %249 = vdwg.mxu0
    %v250 = vmax.f32 %v204, 0.0
    %v251 = vmax.f32 %v207, 0.0
    %v252 = vmax.f32 %v212, 0.0
    %v253 = vmax.f32 %v215, 0.0
    %v254 = vmax.f32 %v220, 0.0
    %v255 = vmax.f32 %v223, 0.0
    %v256 = vmax.f32 %v228, 0.0
    %v257 = vmax.f32 %v231, 0.0
    %v258 = vmax.f32 %v236, 0.0
    %v259 = vmax.f32 %v239, 0.0
    %v260 = vmax.f32 %v244, 0.0
    %v261 = vmax.f32 %v247, 0.0
    %v262 = vmax.f32 %v250, %v256
    %v263 = vmax.f32 %v251, %v257
    %v264 = vmax.f32 %v252, %v258
    %v265 = vmax.f32 %v253, %v259
    %v266 = vmax.f32 %v254, %v260
    %v267 = vmax.f32 %v255, %v261
    %v268 = vld [vmem:[%s3] sm:$0xff]
    %v269 = vld [vmem:[%s3 + $0x8] sm:$0xff]
    %v270 = vld [vmem:[%s3 + $0x10] sm:$0xff]
    %v271 = vld [vmem:[%s3 + $0x18] sm:$0xff]
    %vm272 = vcmask 392192
    %v274 = vsel %vm272, %v268, 0
    %v277 = vsel %vm272, %v269, 0
    %v280 = vsel %vm272, %v270, 0
    %v283 = vsel %vm272, %v271, 0
    %285 = vmatprep.subr.mxu0 0.0
    %286 = vmatpush1.msra.mxu0 %v262
    %287 = vmatprep.subr.mxu0 0.0
    %288 = vmatpush1.msra.mxu0 %v263
    %289 = vmatprep.subr.mxu0 0.0
    %290 = vmatpush1.msra.mxu0 %v264
    %291 = vmatprep.subr.mxu0 0.0
    %292 = vmatpush1.msra.mxu0 %v265
    %293 = vmatprep.subr.mxu0 0.0
    %294 = vmatpush1.msra.mxu0 %v266
    %295 = vmatprep.subr.mxu0 0.0
    %296 = vmatpush1.msra.mxu0 %v267
    %297 = vmatprep.subr.mxu0 0.0
    %298 = vmatpush1.msra.mxu0 0.0
    %299 = vmatprep.subr.mxu0 0.0
    %300 = vmatpush1.msra.mxu0 0.0
    %301 = vmatprep.subr.mxu0 0.0
    %302 = vmatpush1.msra.mxu0 0.0
    %303 = vmatprep.subr.mxu0 0.0
    %304 = vmatpush1.msra.mxu0 0.0
    %305 = vmatprep.subr.mxu0 0.0
    %306 = vmatpush1.msra.mxu0 0.0
    %307 = vmatprep.subr.mxu0 0.0
    %308 = vmatpush1.msra.mxu0 0.0
    %309 = vmatprep.subr.mxu0 0.0
    %310 = vmatpush1.msra.mxu0 0.0
    %311 = vmatprep.subr.mxu0 0.0
    %312 = vmatpush1.msra.mxu0 0.0
    %313 = vmatprep.subr.mxu0 0.0
    %314 = vmatpush1.msra.mxu0 0.0
    %315 = vmatprep.subr.mxu0 0.0
    %316 = vmatpush1.msra.mxu0 0.0
    %317 = vmatprep.subr.mxu0 0.0
    %318 = vmatpush1.msra.mxu0 0.0
    %319 = vmatprep.subr.mxu0 0.0
    %320 = vmatpush1.msra.mxu0 0.0
    %321 = vmatprep.subr.mxu0 0.0
    %322 = vmatpush1.msra.mxu0 0.0
    %323 = vmatprep.subr.mxu0 0.0
    %324 = vmatpush1.msra.mxu0 0.0
    %325 = vmatprep.subr.mxu0 0.0
    %326 = vmatpush1.msra.mxu0 0.0
    %327 = vmatprep.subr.mxu0 0.0
    %328 = vmatpush1.msra.mxu0 0.0
    %329 = vmatprep.subr.mxu0 0.0
    %330 = vmatpush1.msra.mxu0 0.0
    %331 = vmatprep.subr.mxu0 0.0
    %332 = vmatpush1.msra.mxu0 0.0
    %333 = vmatprep.subr.mxu0 0.0
    %334 = vmatpush1.msra.mxu0 0.0
    %335 = vmatprep.subr.mxu0 0.0
    %336 = vmatpush1.msra.mxu0 0.0
    %337 = vmatprep.subr.mxu0 0.0
    %338 = vmatpush1.msra.mxu0 0.0
    %339 = vmatprep.subr.mxu0 0.0
    %340 = vmatpush1.msra.mxu0 0.0
    %341 = vmatprep.subr.mxu0 0.0
    %342 = vmatpush1.msra.mxu0 0.0
    %343 = vmatprep.subr.mxu0 0.0
    %344 = vmatpush1.msra.mxu0 0.0
    %345 = vmatprep.subr.mxu0 0.0
    %346 = vmatpush1.msra.mxu0 0.0
    %347 = vmatprep.subr.mxu0 0.0
    %348 = vmatpush1.msra.mxu0 0.0
    %349 = vmatprep.mubr.f32.mxu0 0.0
    %350 = vmatmul.mubr.f32.gmra.mrb[0].mxu0 %v274
    %v351 = vpop.f32.mrb[0].mxu0
    %v352 = vadd.f32 0.0, %v351
    %v353 = vpop.f32.mrb[0].mxu0
    %354 = vmatprep.mubr.f32.mxu0 0.0
    %355 = vmatmul.mubr.f32.gmra.mrb[0].mxu0 %v277
    %v356 = vpop.f32.mrb[0].mxu0
    %v357 = vadd.f32 0.0, %v356
    %v358 = vpop.f32.mrb[0].mxu0
    %359 = vmatprep.mubr.f32.mxu0 0.0
    %360 = vmatmul.mubr.f32.gmra.mrb[0].mxu0 %v280
    %v361 = vpop.f32.mrb[0].mxu0
    %v362 = vadd.f32 0.0, %v361
    %v363 = vpop.f32.mrb[0].mxu0
    %364 = vmatprep.mubr.f32.mxu0 0.0
    %365 = vmatmul.mubr.f32.gmra.mrb[0].mxu0 %v283
    %v366 = vpop.f32.mrb[0].mxu0
    %v367 = vadd.f32 0.0, %v366
    %v368 = vpop.f32.mrb[0].mxu0
    %369 = vdwg.mxu0
    %v370 = vmax.f32 %v352, %v357
    %v371 = vmax.f32 %v362, %v367
    %v372 = vmax.f32 %v370, %v371
    %v373 = vld [vmem:[%s4] sm:$0xff]
    %375 = vset.pattern.permute.xlu0 0
    %376 = vperm.xlu0 %375, %v373
    %v377 = vpop.permute.xlu0 %376
    %v379 = vadd.f32 %v372, %v377
    %v380 = vrot.slane %v379, 4
    %v381 = vmax.f32 %v379, %v380
    %v382 = vrot.slane %v381, 2
    %v383 = vmax.f32 %v381, %v382
    %v384 = vrot.slane %v383, 1
    %v385 = vmax.f32 %v383, %v384
    %v386 = vxor.u32 %v385, 2147483648
    %v387 = vmul.f32 %v386, 1.442695
    %v388 = vpow.pop %v387
    %v389 = vadd.f32 %v388, 1.0
    %v390 = vrcp.pop %v389
    %v391 = vmul.f32 1.0, %v390
    %392 = vst [vmem:[#allocation2] sm:$0x1] %v391
    // Predicated region
    $region22: #{tpu_custom_call.1} parent=1 // pred_check
      _
    $region23: #{tpu_custom_call.1} parent=1 // pred_check_branch
      %394 = sbr.rel (0) target = $region25
    $region24: #{tpu_custom_call.1} parent=1 // pred_region
      %s396 = ssub.s32 16, 16
      %397 = vsyncadd [#allocation3], %s396
      %s399 = sshll.u32 [#allocation2], 4
      %s400 = int_to_ptr.vmem [resolvable:$true] %s399
      %402 = dma.vmem_to_hbm [thread:$0]  %s400, 16, %s5, [#allocation3]
    $region25: #{tpu_custom_call.1} parent=1 // pred_fallthru
      _
    // Predicated region
    $region26: #{tpu_custom_call.1} parent=1 // pred_check
      _
    $region27: #{tpu_custom_call.1} parent=1 // pred_check_branch
      %404 = sbr.rel (0) target = $region29
    $region28: #{tpu_custom_call.1} parent=1 // pred_region
      %405 = dma.done [#allocation3], 16
    $region29: #{tpu_custom_call.1} parent=1 // pred_fallthru
      _
    %406 = vsyncpa [#allocation3], 1

</llo_original>
